<compile_context>
chip_gen: v5e
topology: v5e:2x2
jax: 0.10.0
libtpu: 0.0.40
codegen_flags: <defaults>
</compile_context>

<pallas_src>
import functools
import math

import jax
import jax.numpy as jnp
from jax.experimental import pallas as pl
from jax.experimental.pallas import tpu as pltpu

ALPHA = 0.03333333333333333
GAMMA = 2.0


def _focal_loss_kernel(x_ref, t_ref, partial_ref, *, gamma):
    """Accumulate un-normalized (1-pt)^gamma * bce into a lane-resident
    (8, D) partial-sum slab. alpha and the mean divide happen in the wrapper."""
    i = pl.program_id(1)

    @pl.when(i == 0)
    def _():
        partial_ref[...] = jnp.zeros_like(partial_ref)

    x = x_ref[...].astype(jnp.float32)
    t = t_ref[...].astype(jnp.float32)

    # Numerically-stable BCE-with-logits (pos_weight == 1.0).
    bce = jnp.maximum(x, 0.0) - x * t + jnp.log1p(jnp.exp(-jnp.abs(x)))
    pt = jnp.exp(-bce)
    one_minus_pt = 1.0 - pt

    g = float(gamma)
    if g.is_integer() and g >= 0:
        gi = int(g)
        if gi == 0:
            mod = jnp.ones_like(one_minus_pt)
        else:
            # integer-exponent multiply chain (gamma==2 -> one square on the VPU,
            # avoids exp(gamma*log(.)) and the log(0) path when bce == 0)
            mod = one_minus_pt
            for _ in range(gi - 1):
                mod = mod * one_minus_pt
    else:
        mod = one_minus_pt ** jnp.float32(g)

    f = mod * bce  # alpha and 1/total hoisted to the wrapper finalize

    br, d = f.shape
    # Sublane-grouped VPU accumulation: keeps the lane dim intact (no XLU
    # cross-lane reduce, no masked (1,1) store per step).
    partial_ref[...] += f.reshape(br // 8, 8, d).sum(axis=0)


def _largest_block_rows(rows, target):
    """Largest multiple of 8 that divides `rows` and is <= target."""
    best = 8
    cand = 16
    limit = min(rows, target)
    while cand <= limit:
        if rows % cand == 0:
            best = cand
        cand += 8
    return best


def focal_loss(inputs, targets, alpha=ALPHA, gamma=GAMMA,
               target_block_rows=1024, num_slices=None):
    """Pallas focal loss. inputs/targets: (N, D) logits / {0,1} labels (any
    float dtype; cast to f32 in-register). Returns scalar mean focal loss."""
    assert inputs.shape == targets.shape
    n, d = inputs.shape
    assert n % 8 == 0, "row count must be a multiple of 8"

    # Leading "parallel" axis: 2 slices so a 2-TC chip (v7x) can split the rows.
    if num_slices is None:
        num_slices = 2 if (n // 8) % 2 == 0 else 1
    rows_per_slice = n // num_slices

    # Large, VMEM-friendly blocks: 1024 rows x D f32 = 1 MiB/input/buffer at
    # D=256 -> 2 inputs x 2 pipeline buffers = 4 MiB, well inside every
    # generation's scoped-VMEM default (16/32 MiB).
    block_rows = _largest_block_rows(rows_per_slice, target_block_rows)
    inner = rows_per_slice // block_rows

    kernel = functools.partial(_focal_loss_kernel, gamma=gamma)

    partial = pl.pallas_call(
        kernel,
        out_shape=jax.ShapeDtypeStruct((num_slices, 8, d), jnp.float32),
        grid_spec=pltpu.PrefetchScalarGridSpec(
            num_scalar_prefetch=0,
            grid=(num_slices, inner),
            in_specs=[
                pl.BlockSpec((block_rows, d), lambda p, i: (p * inner + i, 0)),
                pl.BlockSpec((block_rows, d), lambda p, i: (p * inner + i, 0)),
            ],
            # Output block stays resident across the inner (reduction) axis and
            # doubles as the accumulator; leading dim squeezed in the kernel.
            out_specs=pl.BlockSpec((None, 8, d), lambda p, i: (p, 0, 0)),
        ),
        compiler_params=pltpu.CompilerParams(
            dimension_semantics=("parallel", "arbitrary")),
    )(inputs, targets)

    # Tiny finalize in XLA: cross-lane reduce of num_slices*8*D partials,
    # then apply alpha and the mean normalization once.
    return partial.sum() * jnp.float32(alpha / (n * d))


def focal_loss_ref(inputs, targets, alpha=ALPHA, gamma=GAMMA):
    x = inputs.astype(jnp.float32)
    t = targets.astype(jnp.float32)
    bce = jnp.maximum(x, 0.0) - x * t + jnp.log1p(jnp.exp(-jnp.abs(x)))
    pt = jnp.exp(-bce)
    return jnp.mean(alpha * (1.0 - pt) ** gamma * bce)


if __name__ == "__main__":
    key = jax.random.PRNGKey(0)
    k1, k2 = jax.random.split(key)

    N, D = 128, 256  # small synthetic (logits, binary labels)
    logits = jax.random.normal(k1, (N, D), dtype=jnp.float32) * 2.0
    targets = (jax.random.uniform(k2, (N, D)) > 0.5).astype(jnp.float32)

    out = focal_loss(logits, targets)
    out = jax.block_until_ready(out)

    ref = focal_loss_ref(logits, targets)
    assert jnp.allclose(out, ref, rtol=1e-5, atol=1e-6), (out, ref)

    # bf16 path: no wrapper-side upcast, kernel casts in-register.
    logits_bf16 = logits.astype(jnp.bfloat16)
    targets_bf16 = targets.astype(jnp.bfloat16)
    out_bf16 = jax.block_until_ready(focal_loss(logits_bf16, targets_bf16))
    ref_bf16 = focal_loss_ref(logits_bf16, targets_bf16)
    assert jnp.allclose(out_bf16, ref_bf16, rtol=1e-3, atol=1e-4), (out_bf16, ref_bf16)

    print("KERNEL_OK")
</pallas_src>

<mosaic_0001>
module attributes {stable_mosaic.version = 11 : i64} {
  func.func @_focal_loss_kernel(%arg0: i32, %arg1: i32, %arg2: memref<64x256xf32, #tpu.memory_space<vmem>>, %arg3: memref<64x256xf32, #tpu.memory_space<vmem>>, %arg4: memref<1x8x256xf32, #tpu.memory_space<vmem>>) attributes {dimension_semantics = [#tpu.dimension_semantics<parallel>, #tpu.dimension_semantics<arbitrary>], iteration_bounds = array<i64: 2, 1>, scalar_prefetch = 0 : i64, scratch_operands = 0 : i64, tpu.core_type = #tpu.core_type<tc>, window_params = [{transform_indices = @transform_0, window_bounds = array<i64: 64, 256>}, {transform_indices = @transform_1, window_bounds = array<i64: 64, 256>}, {transform_indices = @transform_2, window_bounds = array<i64: 1, 8, 256>}]} {
    %c0_i32 = arith.constant 0 : i32
    %0 = arith.cmpi eq, %arg1, %c0_i32 : i32
    %1 = arith.extui %0 : i1 to i32
    %c0_i32_0 = arith.constant 0 : i32
    %2 = arith.cmpi ne, %1, %c0_i32_0 : i32
    scf.if %2 {
      %cst_14 = arith.constant 0.000000e+00 : f32
      %30 = vector.broadcast %cst_14 : f32 to vector<8x256xf32>
      %c0_15 = arith.constant 0 : index
      %c0_16 = arith.constant 0 : index
      %c0_17 = arith.constant 0 : index
      %31 = vector.load %arg4[%c0_15, %c0_16, %c0_17] : memref<1x8x256xf32, #tpu.memory_space<vmem>>, vector<1x8x256xf32>
      %32 = vector.shape_cast %31 : vector<1x8x256xf32> to vector<8x256xf32>
      %33 = vector.shape_cast %30 : vector<8x256xf32> to vector<1x8x256xf32>
      tpu.vector_store %arg4[%c0_15, %c0_16, %c0_17], %33 {strides = array<i32>} : memref<1x8x256xf32, #tpu.memory_space<vmem>>, vector<1x8x256xf32>,
    } else {
    }
    %c0 = arith.constant 0 : index
    %c0_1 = arith.constant 0 : index
    %3 = vector.load %arg2[%c0, %c0_1] : memref<64x256xf32, #tpu.memory_space<vmem>>, vector<64x256xf32>
    %c0_2 = arith.constant 0 : index
    %c0_3 = arith.constant 0 : index
    %4 = vector.load %arg3[%c0_2, %c0_3] : memref<64x256xf32, #tpu.memory_space<vmem>>, vector<64x256xf32>
    %cst = arith.constant 0.000000e+00 : f32
    %5 = vector.broadcast %cst : f32 to vector<64x256xf32>
    %6 = arith.maximumf %3, %5 : vector<64x256xf32>
    %7 = arith.mulf %3, %4 : vector<64x256xf32>
    %8 = arith.subf %6, %7 : vector<64x256xf32>
    %9 = math.absf %3 : vector<64x256xf32>
    %cst_4 = arith.constant 0.000000e+00 : f32
    %10 = vector.broadcast %cst_4 : f32 to vector<64x256xf32>
    %11 = arith.subf %10, %9 : vector<64x256xf32>
    %12 = math.exp %11 : vector<64x256xf32>
    %13 = math.log1p %12 : vector<64x256xf32>
    %14 = arith.addf %8, %13 : vector<64x256xf32>
    %cst_5 = arith.constant 0.000000e+00 : f32
    %15 = vector.broadcast %cst_5 : f32 to vector<64x256xf32>
    %16 = arith.subf %15, %14 : vector<64x256xf32>
    %17 = math.exp %16 : vector<64x256xf32>
    %cst_6 = arith.constant 1.000000e+00 : f32
    %18 = vector.broadcast %cst_6 : f32 to vector<64x256xf32>
    %19 = arith.subf %18, %17 : vector<64x256xf32>
    %20 = arith.mulf %19, %19 : vector<64x256xf32>
    %21 = arith.mulf %20, %14 : vector<64x256xf32>
    %c0_7 = arith.constant 0 : index
    %c0_8 = arith.constant 0 : index
    %c0_9 = arith.constant 0 : index
    %22 = vector.load %arg4[%c0_7, %c0_8, %c0_9] : memref<1x8x256xf32, #tpu.memory_space<vmem>>, vector<1x8x256xf32>
    %23 = vector.shape_cast %22 : vector<1x8x256xf32> to vector<8x256xf32>
    %24 = vector.shape_cast %21 : vector<64x256xf32> to vector<8x8x256xf32>
    %cst_10 = arith.constant dense<0.000000e+00> : vector<8x256xf32>
    %25 = vector.multi_reduction <add>, %24, %cst_10 [0] : vector<8x8x256xf32> to vector<8x256xf32>
    %26 = arith.addf %23, %25 : vector<8x256xf32>
    %c0_11 = arith.constant 0 : index
    %c0_12 = arith.constant 0 : index
    %c0_13 = arith.constant 0 : index
    %27 = vector.load %arg4[%c0_11, %c0_12, %c0_13] : memref<1x8x256xf32, #tpu.memory_space<vmem>>, vector<1x8x256xf32>
    %28 = vector.shape_cast %27 : vector<1x8x256xf32> to vector<8x256xf32>
    %29 = vector.shape_cast %26 : vector<8x256xf32> to vector<1x8x256xf32>
    tpu.vector_store %arg4[%c0_11, %c0_12, %c0_13], %29 {strides = array<i32>} : memref<1x8x256xf32, #tpu.memory_space<vmem>>, vector<1x8x256xf32>,
    return
  }
  func.func @transform_0(%arg0: i32, %arg1: i32) -> (i32, i32) {
    %c1_i32 = arith.constant 1 : i32
    %0 = arith.muli %arg0, %c1_i32 : i32
    %1 = arith.addi %0, %arg1 : i32
    %c0_i32 = arith.constant 0 : i32
    %c0_i32_0 = arith.constant 0 : i32
    return %1, %c0_i32 : i32, i32
  }
  func.func @transform_1(%arg0: i32, %arg1: i32) -> (i32, i32) {
    %c1_i32 = arith.constant 1 : i32
    %0 = arith.muli %arg0, %c1_i32 : i32
    %1 = arith.addi %0, %arg1 : i32
    %c0_i32 = arith.constant 0 : i32
    %c0_i32_0 = arith.constant 0 : i32
    return %1, %c0_i32 : i32, i32
  }
  func.func @transform_2(%arg0: i32, %arg1: i32) -> (i32, i32, i32) {
    %c0_i32 = arith.constant 0 : i32
    %c0_i32_0 = arith.constant 0 : i32
    %c0_i32_1 = arith.constant 0 : i32
    return %arg0, %c0_i32, %c0_i32_0 : i32, i32, i32
  }
}

</mosaic_0001>

<llo_original>
// kernel: tpu_custom_call.1
$region0: #{tpu_custom_call.1}
  #allocation0 [shape = 'u32[]', space=smem, size = 0x4, offset = 0x4, fixed_abs, tag = 'smem constant byte address 0x4 - core index']
  #allocation1 [shape = 'u32[72,128]{1,0:T(1,128)}', space=vmem, size = 0x9000, scoped, tag = 'internal scratch']
  %s0 = inlined_call_operand.hbm [shape: f32[128,256], index: 0, kind: input, shape index: {}]
  %s1 = inlined_call_operand.hbm [shape: f32[128,256], index: 1, kind: input, shape index: {}]
  %s2 = inlined_call_operand.hbm [shape: f32[2,8,256], index: 2, kind: output, shape index: {}]
  %s3 = sld [smem:[#allocation0]]
  $region53: #{tpu_custom_call.1} parent=0
    _
  %s5 = ssub.s32 1, %s3
  %s6 = scalar_select 0, %s5, %s3
  $region1: #{tpu_custom_call.1} parent=0
    #allocation2 [shape = 'u8[131072]{0}', space=vmem, size = 0x20000, scoped, tag = 'input window, operand 0']
    #allocation3 [shape = 's32[2]{0}', space=sflag, size = 0x8, scoped, tag = 'scoped memory for tpu_custom_call.1']
    #allocation4 [shape = 's32[2]{0}', space=sflag, size = 0x8, scoped, tag = 'scoped memory for tpu_custom_call.1']
    #allocation5 [shape = 'u8[131072]{0}', space=vmem, size = 0x20000, scoped, tag = 'input window, operand 1']
    #allocation6 [shape = 's32[2]{0}', space=sflag, size = 0x8, scoped, tag = 'scoped memory for tpu_custom_call.1']
    #allocation7 [shape = 'u8[16384]{0}', space=vmem, size = 0x4000, scoped, tag = 'output window, operand 0']
    %7 = vsyncpa [#allocation3], 0
    %s8 = scalar_lea.sflag [#allocation3], 1
    %9 = vsyncpa %s8, 0
    %10 = vsyncpa [#allocation6], 0
    %s11 = scalar_lea.sflag [#allocation6], 1
    %12 = vsyncpa %s11, 0
    %13 = vsyncpa [#allocation4], 0
    %s14 = scalar_lea.sflag [#allocation4], 1
    %15 = vsyncpa %s14, 0
    loop: start=0, step=1, limit=4
    $region2: #{tpu_custom_call.1} parent=1 // loop_pre_header
      _
    $region3: #{tpu_custom_call.1} parent=1 // loop_header
      %s17 = sphi 0, %s21
      %p18 = scmp.ge.s32.totalorder %s17, 4
      %s24 = sphi 0, %s36
      %s25 = sphi 0, %s32
      %s26 = sphi 0, %s24
      %s27 = sphi 0, %s25
      %s28 = sphi 0, %s26
      %s29 = sphi 0, %s27
      %s41 = sphi 0, %s43
      %s44 = sphi 0, %s41
      %s45 = sphi 0, %s44
      %s61 = sphi 0, %s45
      %s69 = sphi 0, %s71
      %s72 = sphi 0, %s69
      %s73 = sphi 0, %s72
      %s89 = sphi 0, %s73
      %s95 = sphi 0, %s97
      %s98 = sphi 0, %s95
      %s99 = sphi 0, %s98
      %s115 = sphi 0, %s99
    $region4: #{tpu_custom_call.1} parent=1 // loop_header_branch
      %20 = sbr.rel (%p18) target = $region8
    $region5: #{tpu_custom_call.1} parent=1 // loop_body
      %s22 = ssub.s32 %s17, 1
      %s23 = ssub.s32 %s17, 2
      %s30 = sadd.s32 1, %s25
      %p31 = scmp.ge.s32.totalorder %s30, 1
      %s32 = scalar_select %p31, 0, %s30
      %s33 = sadd.s32 1, %s24
      %s34 = scalar_select %p31, %s33, %s24
      %p35 = scmp.ge.s32.totalorder %s34, 2
      %s36 = scalar_select %p35, 0, %s34
      %s37 = sadd.s32 %s24, %s25
      %s38 = sadd.s32 %s36, %s32
      %s39 = ssub.s32 %s37, %s38
      %p40 = scmp.eq.s32.totalorder %s39, 0
      %s42 = sadd.s32 %s41, 1
      %s43 = scalar_select %p40, %s41, %s42
      %p46 = pneg %p40
      %p47 = scmp.eq.s32.totalorder %s17, 1
      %p48 = por %p46, %p47
      %p49 = scmp.ne.s32.totalorder %s41, %s44
      %p50 = scmp.eq.s32.totalorder %s17, 0
      %p51 = por %p49, %p50
      %p52 = scmp.ne.s32.totalorder %s41, %s44
      %p53 = scmp.eq.s32.totalorder %s22, 1
      %p54 = por %p52, %p53
      %p55 = scmp.ne.s32.totalorder %s44, %s45
      %p56 = scmp.eq.s32.totalorder %s22, 0
      %p57 = por %p55, %p56
      %p58 = scmp.ne.s32.totalorder %s44, %s45
      %p59 = scmp.eq.s32.totalorder %s23, 1
      %p60 = por %p58, %p59
      %p62 = scmp.ne.s32.totalorder %s45, %s61
      %p63 = scmp.eq.s32.totalorder %s23, 0
      %p64 = por %p62, %p63
      %s65 = sadd.s32 %s24, %s25
      %s66 = sadd.s32 %s36, %s32
      %s67 = ssub.s32 %s65, %s66
      %p68 = scmp.eq.s32.totalorder %s67, 0
      %s70 = sadd.s32 %s69, 1
      %s71 = scalar_select %p68, %s69, %s70
      %p74 = pneg %p68
      %p75 = scmp.eq.s32.totalorder %s17, 1
      %p76 = por %p74, %p75
      %p77 = scmp.ne.s32.totalorder %s69, %s72
      %p78 = scmp.eq.s32.totalorder %s17, 0
      %p79 = por %p77, %p78
      %p80 = scmp.ne.s32.totalorder %s69, %s72
      %p81 = scmp.eq.s32.totalorder %s22, 1
      %p82 = por %p80, %p81
      %p83 = scmp.ne.s32.totalorder %s72, %s73
      %p84 = scmp.eq.s32.totalorder %s22, 0
      %p85 = por %p83, %p84
      %p86 = scmp.ne.s32.totalorder %s72, %s73
      %p87 = scmp.eq.s32.totalorder %s23, 1
      %p88 = por %p86, %p87
      %p90 = scmp.ne.s32.totalorder %s73, %s89
      %p91 = scmp.eq.s32.totalorder %s23, 0
      %p92 = por %p90, %p91
      %s93 = ssub.s32 %s24, %s36
      %p94 = scmp.eq.s32.totalorder %s93, 0
      %s96 = sadd.s32 %s95, 1
      %s97 = scalar_select %p94, %s95, %s96
      %p100 = pneg %p94
      %p101 = scmp.eq.s32.totalorder %s17, 1
      %p102 = por %p100, %p101
      %p103 = scmp.ne.s32.totalorder %s95, %s98
      %p104 = scmp.eq.s32.totalorder %s17, 0
      %p105 = por %p103, %p104
      %p106 = scmp.ne.s32.totalorder %s95, %s98
      %p107 = scmp.eq.s32.totalorder %s22, 1
      %p108 = por %p106, %p107
      %p109 = scmp.ne.s32.totalorder %s98, %s99
      %p110 = scmp.eq.s32.totalorder %s22, 0
      %p111 = por %p109, %p110
      %p112 = scmp.ne.s32.totalorder %s98, %s99
      %p113 = scmp.eq.s32.totalorder %s23, 1
      %p114 = por %p112, %p113
      %p116 = scmp.ne.s32.totalorder %s99, %s115
      %p117 = scmp.eq.s32.totalorder %s23, 0
      %p118 = por %p116, %p117
      %p119 = scmp.le.s32.totalorder 1, %s17
      %p120 = scmp.lt.s32.totalorder %s17, 3
      %p121 = pnand %p119, %p120
      %p122 = pneg %p121
      // Predicated region
      $region9: #{tpu_custom_call.1} parent=5 // pred_check
        _
      $region10: #{tpu_custom_call.1} parent=5 // pred_check_branch
        %124 = sbr.rel (%p121) target = $region12
      $region11: #{tpu_custom_call.1} parent=5 // pred_region
        %s125 = ssub.s32 %s17, 1
      $region12: #{tpu_custom_call.1} parent=5 // pred_fallthru
        _
      %p126 = scmp.lt.s32.totalorder %s17, 2
      // Predicated region
      $region13: #{tpu_custom_call.1} parent=5 // pred_check
        %p127 = pneg %p126
      $region14: #{tpu_custom_call.1} parent=5 // pred_check_branch
        %129 = sbr.rel (%p127) target = $region16
      $region15: #{tpu_custom_call.1} parent=5 // pred_region
        // Predicated region
        $region17: #{tpu_custom_call.1} parent=15 // pred_check
          %p130 = pneg %p51
        $region18: #{tpu_custom_call.1} parent=15 // pred_check_branch
          %132 = sbr.rel (%p130) target = $region20
        $region19: #{tpu_custom_call.1} parent=15 // pred_region
          %s133 = sand.u32 %s41, 1
          %s134 = scalar_lea.sflag [#allocation3], %s133
          %s135 = sand.u32 %s41, 1
          %s136 = smul.addr %s135, 128
          %s137 = scalar_lea.vmem [#allocation2], %s136
          %s138 = sadd.s32 %s24, %s25
          %s139 = smul.u32 8, %s138
          %141 = vsyncadd %s134, 0
          %s142 = smul.addr %s139, 2
          %s143 = smul.addr %s142, 8
          %s144 = scalar_lea.hbm %s0, %s143
          %s145 = sshll.u32 %s144, 4
          %s146 = int_to_ptr.hbm [resolvable:$true] %s145
          %s147 = sshll.u32 %s137, 4
          %s148 = int_to_ptr.vmem [resolvable:$true] %s147
          %153 = dma.hbm_to_vmem [thread:$0]  %s146, 2048, %s148, %s134, 256, 256, 16
        $region20: #{tpu_custom_call.1} parent=15 // pred_fallthru
          _
        // Predicated region
        $region21: #{tpu_custom_call.1} parent=15 // pred_check
          %p154 = pneg %p79
        $region22: #{tpu_custom_call.1} parent=15 // pred_check_branch
          %156 = sbr.rel (%p154) target = $region24
        $region23: #{tpu_custom_call.1} parent=15 // pred_region
          %s157 = sand.u32 %s69, 1
          %s158 = scalar_lea.sflag [#allocation6], %s157
          %s159 = sand.u32 %s69, 1
          %s160 = smul.addr %s159, 128
          %s161 = scalar_lea.vmem [#allocation5], %s160
          %s162 = sadd.s32 %s24, %s25
          %s163 = smul.u32 8, %s162
          %165 = vsyncadd %s158, 0
          %s166 = smul.addr %s163, 2
          %s167 = smul.addr %s166, 8
          %s168 = scalar_lea.hbm %s1, %s167
          %s169 = sshll.u32 %s168, 4
          %s170 = int_to_ptr.hbm [resolvable:$true] %s169
          %s171 = sshll.u32 %s161, 4
          %s172 = int_to_ptr.vmem [resolvable:$true] %s171
          %177 = dma.hbm_to_vmem [thread:$0]  %s170, 2048, %s172, %s158, 256, 256, 16
        $region24: #{tpu_custom_call.1} parent=15 // pred_fallthru
          _
      $region16: #{tpu_custom_call.1} parent=5 // pred_fallthru
        _
      %p178 = scmp.le.s32.totalorder 1, %s17
      %p179 = scmp.lt.s32.totalorder %s17, 3
      %p180 = pnand %p178, %p179
      %p181 = pneg %p180
      // Predicated region
      $region25: #{tpu_custom_call.1} parent=5 // pred_check
        _
      $region26: #{tpu_custom_call.1} parent=5 // pred_check_branch
        %183 = sbr.rel (%p180) target = $region28
      $region27: #{tpu_custom_call.1} parent=5 // pred_region
        %s184 = ssub.s32 %s17, 1
        %s185 = sand.u32 %s44, 1
        %s186 = scalar_lea.sflag [#allocation3], %s185
        %s187 = sand.u32 %s44, 1
        %s188 = smul.addr %s187, 128
        %s189 = scalar_lea.vmem [#allocation2], %s188
        // Predicated region
        $region29: #{tpu_custom_call.1} parent=27 // pred_check
          %p190 = pneg %p57
        $region30: #{tpu_custom_call.1} parent=27 // pred_check_branch
          %192 = sbr.rel (%p190) target = $region32
        $region31: #{tpu_custom_call.1} parent=27 // pred_region
          %194 = dma.done %s186, 2048
        $region32: #{tpu_custom_call.1} parent=27 // pred_fallthru
          _
        %s195 = sand.u32 %s72, 1
        %s196 = scalar_lea.sflag [#allocation6], %s195
        %s197 = sand.u32 %s72, 1
        %s198 = smul.addr %s197, 128
        %s199 = scalar_lea.vmem [#allocation5], %s198
        // Predicated region
        $region33: #{tpu_custom_call.1} parent=27 // pred_check
          %p200 = pneg %p85
        $region34: #{tpu_custom_call.1} parent=27 // pred_check_branch
          %202 = sbr.rel (%p200) target = $region36
        $region35: #{tpu_custom_call.1} parent=27 // pred_region
          %204 = dma.done %s196, 2048
        $region36: #{tpu_custom_call.1} parent=27 // pred_fallthru
          _
        %s205 = sand.u32 %s44, 1
        %s206 = scalar_lea.sflag [#allocation3], %s205
        %s207 = sand.u32 %s44, 1
        %s208 = smul.addr %s207, 128
        %s209 = scalar_lea.vmem [#allocation2], %s208
        %p210 = pneg %p57
        %p211 = pneg %p54
        %s212 = sand.u32 %s72, 1
        %s213 = scalar_lea.sflag [#allocation6], %s212
        %s214 = sand.u32 %s72, 1
        %s215 = smul.addr %s214, 128
        %s216 = scalar_lea.vmem [#allocation5], %s215
        %p217 = pneg %p85
        %p218 = pneg %p82
        %p219 = pneg %p111
        %p220 = pneg %p108
        %s221 = sand.u32 %s98, 1
        %s222 = scalar_lea.sflag [#allocation4], %s221
        %s223 = sand.u32 %s98, 1
        %s224 = smul.addr %s223, 16
        %s225 = scalar_lea.vmem [#allocation7], %s224
        %s226 = sadd.s32 %s26, %s27
        %s227 = smul.u32 8, %s226
        %s228 = sadd.s32 %s26, %s27
        %s229 = smul.u32 8, %s228
        %p230 = scmp.eq.s32.totalorder %s27, 0
        // Predicated region
        $region37: #{tpu_custom_call.1} parent=27 // pred_check
          %p231 = pneg %p230
        $region38: #{tpu_custom_call.1} parent=27 // pred_check_branch
          %233 = sbr.rel (%p231) target = $region40
        $region39: #{tpu_custom_call.1} parent=27 // pred_region
          %234 = vst [vmem:[%s225] sm:$0xff] 0.0
          %235 = vst [vmem:[%s225 + $0x8] sm:$0xff] 0.0
        $region40: #{tpu_custom_call.1} parent=27 // pred_fallthru
          _
        %v236 = vld [vmem:[%s189] sm:$0xff]
        %v237 = vld [vmem:[%s189 + $0x8] sm:$0xff]
        %v238 = vld [vmem:[%s189 + $0x10] sm:$0xff]
        %v239 = vld [vmem:[%s189 + $0x18] sm:$0xff]
        %v240 = vld [vmem:[%s189 + $0x20] sm:$0xff]
        %v241 = vld [vmem:[%s189 + $0x28] sm:$0xff]
        %v242 = vld [vmem:[%s189 + $0x30] sm:$0xff]
        %v243 = vld [vmem:[%s189 + $0x38] sm:$0xff]
        %v244 = vld [vmem:[%s189 + $0x40] sm:$0xff]
        %v245 = vld [vmem:[%s189 + $0x48] sm:$0xff]
        %v246 = vld [vmem:[%s189 + $0x50] sm:$0xff]
        %v247 = vld [vmem:[%s189 + $0x58] sm:$0xff]
        %v248 = vld [vmem:[%s189 + $0x60] sm:$0xff]
        %v249 = vld [vmem:[%s189 + $0x68] sm:$0xff]
        %v250 = vld [vmem:[%s189 + $0x70] sm:$0xff]
        %v251 = vld [vmem:[%s189 + $0x78] sm:$0xff]
        %v252 = vld [vmem:[%s199] sm:$0xff]
        %v253 = vld [vmem:[%s199 + $0x8] sm:$0xff]
        %v254 = vld [vmem:[%s199 + $0x10] sm:$0xff]
        %v255 = vld [vmem:[%s199 + $0x18] sm:$0xff]
        %v256 = vld [vmem:[%s199 + $0x20] sm:$0xff]
        %v257 = vld [vmem:[%s199 + $0x28] sm:$0xff]
        %v258 = vld [vmem:[%s199 + $0x30] sm:$0xff]
        %v259 = vld [vmem:[%s199 + $0x38] sm:$0xff]
        %v260 = vld [vmem:[%s199 + $0x40] sm:$0xff]
        %v261 = vld [vmem:[%s199 + $0x48] sm:$0xff]
        %v262 = vld [vmem:[%s199 + $0x50] sm:$0xff]
        %v263 = vld [vmem:[%s199 + $0x58] sm:$0xff]
        %v264 = vld [vmem:[%s199 + $0x60] sm:$0xff]
        %v265 = vld [vmem:[%s199 + $0x68] sm:$0xff]
        %v266 = vld [vmem:[%s199 + $0x70] sm:$0xff]
        %v267 = vld [vmem:[%s199 + $0x78] sm:$0xff]
        %v268 = vmax.f32 %v236, 0.0
        %v269 = vmax.f32 %v237, 0.0
        %v270 = vmax.f32 %v238, 0.0
        %v271 = vmax.f32 %v239, 0.0
        %v272 = vmax.f32 %v240, 0.0
        %v273 = vmax.f32 %v241, 0.0
        %v274 = vmax.f32 %v242, 0.0
        %v275 = vmax.f32 %v243, 0.0
        %v276 = vmax.f32 %v244, 0.0
        %v277 = vmax.f32 %v245, 0.0
        %v278 = vmax.f32 %v246, 0.0
        %v279 = vmax.f32 %v247, 0.0
        %v280 = vmax.f32 %v248, 0.0
        %v281 = vmax.f32 %v249, 0.0
        %v282 = vmax.f32 %v250, 0.0
        %v283 = vmax.f32 %v251, 0.0
        %v284 = vmul.f32 %v236, %v252
        %v285 = vmul.f32 %v237, %v253
        %v286 = vmul.f32 %v238, %v254
        %v287 = vmul.f32 %v239, %v255
        %v288 = vmul.f32 %v240, %v256
        %v289 = vmul.f32 %v241, %v257
        %v290 = vmul.f32 %v242, %v258
        %v291 = vmul.f32 %v243, %v259
        %v292 = vmul.f32 %v244, %v260
        %v293 = vmul.f32 %v245, %v261
        %v294 = vmul.f32 %v246, %v262
        %v295 = vmul.f32 %v247, %v263
        %v296 = vmul.f32 %v248, %v264
        %v297 = vmul.f32 %v249, %v265
        %v298 = vmul.f32 %v250, %v266
        %v299 = vmul.f32 %v251, %v267
        %v300 = vsub.f32 %v268, %v284
        %v301 = vsub.f32 %v269, %v285
        %v302 = vsub.f32 %v270, %v286
        %v303 = vsub.f32 %v271, %v287
        %v304 = vsub.f32 %v272, %v288
        %v305 = vsub.f32 %v273, %v289
        %v306 = vsub.f32 %v274, %v290
        %v307 = vsub.f32 %v275, %v291
        %v308 = vsub.f32 %v276, %v292
        %v309 = vsub.f32 %v277, %v293
        %v310 = vsub.f32 %v278, %v294
        %v311 = vsub.f32 %v279, %v295
        %v312 = vsub.f32 %v280, %v296
        %v313 = vsub.f32 %v281, %v297
        %v314 = vsub.f32 %v282, %v298
        %v315 = vsub.f32 %v283, %v299
        %v316 = vand.u32 2147483647, %v236
        %v317 = vand.u32 2147483647, %v237
        %v318 = vand.u32 2147483647, %v238
        %v319 = vand.u32 2147483647, %v239
        %v320 = vand.u32 2147483647, %v240
        %v321 = vand.u32 2147483647, %v241
        %v322 = vand.u32 2147483647, %v242
        %v323 = vand.u32 2147483647, %v243
        %v324 = vand.u32 2147483647, %v244
        %v325 = vand.u32 2147483647, %v245
        %v326 = vand.u32 2147483647, %v246
        %v327 = vand.u32 2147483647, %v247
        %v328 = vand.u32 2147483647, %v248
        %v329 = vand.u32 2147483647, %v249
        %v330 = vand.u32 2147483647, %v250
        %v331 = vand.u32 2147483647, %v251
        %v332 = vsub.f32 0.0, %v316
        %v333 = vsub.f32 0.0, %v317
        %v334 = vsub.f32 0.0, %v318
        %v335 = vsub.f32 0.0, %v319
        %v336 = vsub.f32 0.0, %v320
        %v337 = vsub.f32 0.0, %v321
        %v338 = vsub.f32 0.0, %v322
        %v339 = vsub.f32 0.0, %v323
        %v340 = vsub.f32 0.0, %v324
        %v341 = vsub.f32 0.0, %v325
        %v342 = vsub.f32 0.0, %v326
        %v343 = vsub.f32 0.0, %v327
        %v344 = vsub.f32 0.0, %v328
        %v345 = vsub.f32 0.0, %v329
        %v346 = vsub.f32 0.0, %v330
        %v347 = vsub.f32 0.0, %v331
        %v348 = vmul.f32 %v332, 1.442695
        %v349 = vpow.pop %v348
        %v350 = vmul.f32 %v333, 1.442695
        %v351 = vpow.pop %v350
        %v352 = vmul.f32 %v334, 1.442695
        %v353 = vpow.pop %v352
        %v354 = vmul.f32 %v335, 1.442695
        %v355 = vpow.pop %v354
        %v356 = vmul.f32 %v336, 1.442695
        %v357 = vpow.pop %v356
        %v358 = vmul.f32 %v337, 1.442695
        %v359 = vpow.pop %v358
        %v360 = vmul.f32 %v338, 1.442695
        %v361 = vpow.pop %v360
        %v362 = vmul.f32 %v339, 1.442695
        %v363 = vpow.pop %v362
        %v364 = vmul.f32 %v340, 1.442695
        %v365 = vpow.pop %v364
        %v366 = vmul.f32 %v341, 1.442695
        %v367 = vpow.pop %v366
        %v368 = vmul.f32 %v342, 1.442695
        %v369 = vpow.pop %v368
        %v370 = vmul.f32 %v343, 1.442695
        %v371 = vpow.pop %v370
        %v372 = vmul.f32 %v344, 1.442695
        %v373 = vpow.pop %v372
        %v374 = vmul.f32 %v345, 1.442695
        %v375 = vpow.pop %v374
        %v376 = vmul.f32 %v346, 1.442695
        %v377 = vpow.pop %v376
        %v378 = vmul.f32 %v347, 1.442695
        %v379 = vpow.pop %v378
        %v380 = vadd.f32 %v349, 1.0
        %v381 = vlog2.pop %v380
        %v382 = vmul.f32 %v381, 0.6931472
        %v383 = vmul.f32 -0.5, %v349
        %v384 = vadd.f32 %v383, 1.0
        %v385 = vmul.f32 %v384, %v349
        %v386 = vand.u32 2147483647, %v349
        %vm387 = vcmp.lt.f32.partialorder %v386, 0.0004427343
        %v388 = vsel %vm387, %v385, %v382
        %v389 = vadd.f32 %v351, 1.0
        %v390 = vlog2.pop %v389
        %v391 = vmul.f32 %v390, 0.6931472
        %v392 = vmul.f32 -0.5, %v351
        %v393 = vadd.f32 %v392, 1.0
        %v394 = vmul.f32 %v393, %v351
        %v395 = vand.u32 2147483647, %v351
        %vm396 = vcmp.lt.f32.partialorder %v395, 0.0004427343
        %v397 = vsel %vm396, %v394, %v391
        %v398 = vadd.f32 %v353, 1.0
        %v399 = vlog2.pop %v398
        %v400 = vmul.f32 %v399, 0.6931472
        %v401 = vmul.f32 -0.5, %v353
        %v402 = vadd.f32 %v401, 1.0
        %v403 = vmul.f32 %v402, %v353
        %v404 = vand.u32 2147483647, %v353
        %vm405 = vcmp.lt.f32.partialorder %v404, 0.0004427343
        %v406 = vsel %vm405, %v403, %v400
        %v407 = vadd.f32 %v355, 1.0
        %v408 = vlog2.pop %v407
        %v409 = vmul.f32 %v408, 0.6931472
        %v410 = vmul.f32 -0.5, %v355
        %v411 = vadd.f32 %v410, 1.0
        %v412 = vmul.f32 %v411, %v355
        %v413 = vand.u32 2147483647, %v355
        %vm414 = vcmp.lt.f32.partialorder %v413, 0.0004427343
        %v415 = vsel %vm414, %v412, %v409
        %v416 = vadd.f32 %v357, 1.0
        %v417 = vlog2.pop %v416
        %v418 = vmul.f32 %v417, 0.6931472
        %v419 = vmul.f32 -0.5, %v357
        %v420 = vadd.f32 %v419, 1.0
        %v421 = vmul.f32 %v420, %v357
        %v422 = vand.u32 2147483647, %v357
        %vm423 = vcmp.lt.f32.partialorder %v422, 0.0004427343
        %v424 = vsel %vm423, %v421, %v418
        %v425 = vadd.f32 %v359, 1.0
        %v426 = vlog2.pop %v425
        %v427 = vmul.f32 %v426, 0.6931472
        %v428 = vmul.f32 -0.5, %v359
        %v429 = vadd.f32 %v428, 1.0
        %v430 = vmul.f32 %v429, %v359
        %v431 = vand.u32 2147483647, %v359
        %vm432 = vcmp.lt.f32.partialorder %v431, 0.0004427343
        %v433 = vsel %vm432, %v430, %v427
        %v434 = vadd.f32 %v361, 1.0
        %v435 = vlog2.pop %v434
        %v436 = vmul.f32 %v435, 0.6931472
        %v437 = vmul.f32 -0.5, %v361
        %v438 = vadd.f32 %v437, 1.0
        %v439 = vmul.f32 %v438, %v361
        %v440 = vand.u32 2147483647, %v361
        %vm441 = vcmp.lt.f32.partialorder %v440, 0.0004427343
        %v442 = vsel %vm441, %v439, %v436
        %v443 = vadd.f32 %v363, 1.0
        %v444 = vlog2.pop %v443
        %v445 = vmul.f32 %v444, 0.6931472
        %v446 = vmul.f32 -0.5, %v363
        %v447 = vadd.f32 %v446, 1.0
        %v448 = vmul.f32 %v447, %v363
        %v449 = vand.u32 2147483647, %v363
        %vm450 = vcmp.lt.f32.partialorder %v449, 0.0004427343
        %v451 = vsel %vm450, %v448, %v445
        %v452 = vadd.f32 %v365, 1.0
        %v453 = vlog2.pop %v452
        %v454 = vmul.f32 %v453, 0.6931472
        %v455 = vmul.f32 -0.5, %v365
        %v456 = vadd.f32 %v455, 1.0
        %v457 = vmul.f32 %v456, %v365
        %v458 = vand.u32 2147483647, %v365
        %vm459 = vcmp.lt.f32.partialorder %v458, 0.0004427343
        %v460 = vsel %vm459, %v457, %v454
        %v461 = vadd.f32 %v367, 1.0
        %v462 = vlog2.pop %v461
        %v463 = vmul.f32 %v462, 0.6931472
        %v464 = vmul.f32 -0.5, %v367
        %v465 = vadd.f32 %v464, 1.0
        %v466 = vmul.f32 %v465, %v367
        %v467 = vand.u32 2147483647, %v367
        %vm468 = vcmp.lt.f32.partialorder %v467, 0.0004427343
        %v469 = vsel %vm468, %v466, %v463
        %v470 = vadd.f32 %v369, 1.0
        %v471 = vlog2.pop %v470
        %v472 = vmul.f32 %v471, 0.6931472
        %v473 = vmul.f32 -0.5, %v369
        %v474 = vadd.f32 %v473, 1.0
        %v475 = vmul.f32 %v474, %v369
        %v476 = vand.u32 2147483647, %v369
        %vm477 = vcmp.lt.f32.partialorder %v476, 0.0004427343
        %v478 = vsel %vm477, %v475, %v472
        %v479 = vadd.f32 %v371, 1.0
        %v480 = vlog2.pop %v479
        %v481 = vmul.f32 %v480, 0.6931472
        %v482 = vmul.f32 -0.5, %v371
        %v483 = vadd.f32 %v482, 1.0
        %v484 = vmul.f32 %v483, %v371
        %v485 = vand.u32 2147483647, %v371
        %vm486 = vcmp.lt.f32.partialorder %v485, 0.0004427343
        %v487 = vsel %vm486, %v484, %v481
        %v488 = vadd.f32 %v373, 1.0
        %v489 = vlog2.pop %v488
        %v490 = vmul.f32 %v489, 0.6931472
        %v491 = vmul.f32 -0.5, %v373
        %v492 = vadd.f32 %v491, 1.0
        %v493 = vmul.f32 %v492, %v373
        %v494 = vand.u32 2147483647, %v373
        %vm495 = vcmp.lt.f32.partialorder %v494, 0.0004427343
        %v496 = vsel %vm495, %v493, %v490
        %v497 = vadd.f32 %v375, 1.0
        %v498 = vlog2.pop %v497
        %v499 = vmul.f32 %v498, 0.6931472
        %v500 = vmul.f32 -0.5, %v375
        %v501 = vadd.f32 %v500, 1.0
        %v502 = vmul.f32 %v501, %v375
        %v503 = vand.u32 2147483647, %v375
        %vm504 = vcmp.lt.f32.partialorder %v503, 0.0004427343
        %v505 = vsel %vm504, %v502, %v499
        %v506 = vadd.f32 %v377, 1.0
        %v507 = vlog2.pop %v506
        %v508 = vmul.f32 %v507, 0.6931472
        %v509 = vmul.f32 -0.5, %v377
        %v510 = vadd.f32 %v509, 1.0
        %v511 = vmul.f32 %v510, %v377
        %v512 = vand.u32 2147483647, %v377
        %vm513 = vcmp.lt.f32.partialorder %v512, 0.0004427343
        %v514 = vsel %vm513, %v511, %v508
        %v515 = vadd.f32 %v379, 1.0
        %v516 = vlog2.pop %v515
        %v517 = vmul.f32 %v516, 0.6931472
        %v518 = vmul.f32 -0.5, %v379
        %v519 = vadd.f32 %v518, 1.0
        %v520 = vmul.f32 %v519, %v379
        %v521 = vand.u32 2147483647, %v379
        %vm522 = vcmp.lt.f32.partialorder %v521, 0.0004427343
        %v523 = vsel %vm522, %v520, %v517
        %v524 = vadd.f32 %v300, %v388
        %v525 = vadd.f32 %v301, %v397
        %v526 = vadd.f32 %v302, %v406
        %v527 = vadd.f32 %v303, %v415
        %v528 = vadd.f32 %v304, %v424
        %v529 = vadd.f32 %v305, %v433
        %v530 = vadd.f32 %v306, %v442
        %v531 = vadd.f32 %v307, %v451
        %v532 = vadd.f32 %v308, %v460
        %v533 = vadd.f32 %v309, %v469
        %v534 = vadd.f32 %v310, %v478
        %v535 = vadd.f32 %v311, %v487
        %v536 = vadd.f32 %v312, %v496
        %v537 = vadd.f32 %v313, %v505
        %v538 = vadd.f32 %v314, %v514
        %v539 = vadd.f32 %v315, %v523
        %v540 = vsub.f32 0.0, %v524
        %v541 = vsub.f32 0.0, %v525
        %v542 = vsub.f32 0.0, %v526
        %v543 = vsub.f32 0.0, %v527
        %v544 = vsub.f32 0.0, %v528
        %v545 = vsub.f32 0.0, %v529
        %v546 = vsub.f32 0.0, %v530
        %v547 = vsub.f32 0.0, %v531
        %v548 = vsub.f32 0.0, %v532
        %v549 = vsub.f32 0.0, %v533
        %v550 = vsub.f32 0.0, %v534
        %v551 = vsub.f32 0.0, %v535
        %v552 = vsub.f32 0.0, %v536
        %v553 = vsub.f32 0.0, %v537
        %v554 = vsub.f32 0.0, %v538
        %v555 = vsub.f32 0.0, %v539
        %v556 = vmul.f32 %v540, 1.442695
        %v557 = vpow.pop %v556
        %v558 = vmul.f32 %v541, 1.442695
        %v559 = vpow.pop %v558
        %v560 = vmul.f32 %v542, 1.442695
        %v561 = vpow.pop %v560
        %v562 = vmul.f32 %v543, 1.442695
        %v563 = vpow.pop %v562
        %v564 = vmul.f32 %v544, 1.442695
        %v565 = vpow.pop %v564
        %v566 = vmul.f32 %v545, 1.442695
        %v567 = vpow.pop %v566
        %v568 = vmul.f32 %v546, 1.442695
        %v569 = vpow.pop %v568
        %v570 = vmul.f32 %v547, 1.442695
        %v571 = vpow.pop %v570
        %v572 = vmul.f32 %v548, 1.442695
        %v573 = vpow.pop %v572
        %v574 = vmul.f32 %v549, 1.442695
        %v575 = vpow.pop %v574
        %v576 = vmul.f32 %v550, 1.442695
        %v577 = vpow.pop %v576
        %v578 = vmul.f32 %v551, 1.442695
        %v579 = vpow.pop %v578
        %v580 = vmul.f32 %v552, 1.442695
        %v581 = vpow.pop %v580
        %v582 = vmul.f32 %v553, 1.442695
        %v583 = vpow.pop %v582
        %v584 = vmul.f32 %v554, 1.442695
        %v585 = vpow.pop %v584
        %v586 = vmul.f32 %v555, 1.442695
        %v587 = vpow.pop %v586
        %v588 = vsub.f32 1.0, %v557
        %v589 = vsub.f32 1.0, %v559
        %v590 = vsub.f32 1.0, %v561
        %v591 = vsub.f32 1.0, %v563
        %v592 = vsub.f32 1.0, %v565
        %v593 = vsub.f32 1.0, %v567
        %v594 = vsub.f32 1.0, %v569
        %v595 = vsub.f32 1.0, %v571
        %v596 = vsub.f32 1.0, %v573
        %v597 = vsub.f32 1.0, %v575
        %v598 = vsub.f32 1.0, %v577
        %v599 = vsub.f32 1.0, %v579
        %v600 = vsub.f32 1.0, %v581
        %v601 = vsub.f32 1.0, %v583
        %v602 = vsub.f32 1.0, %v585
        %v603 = vsub.f32 1.0, %v587
        %v604 = vmul.f32 %v588, %v588
        %v605 = vmul.f32 %v589, %v589
        %v606 = vmul.f32 %v590, %v590
        %v607 = vmul.f32 %v591, %v591
        %v608 = vmul.f32 %v592, %v592
        %v609 = vmul.f32 %v593, %v593
        %v610 = vmul.f32 %v594, %v594
        %v611 = vmul.f32 %v595, %v595
        %v612 = vmul.f32 %v596, %v596
        %v613 = vmul.f32 %v597, %v597
        %v614 = vmul.f32 %v598, %v598
        %v615 = vmul.f32 %v599, %v599
        %v616 = vmul.f32 %v600, %v600
        %v617 = vmul.f32 %v601, %v601
        %v618 = vmul.f32 %v602, %v602
        %v619 = vmul.f32 %v603, %v603
        %v620 = vmul.f32 %v604, %v524
        %v621 = vmul.f32 %v605, %v525
        %v622 = vmul.f32 %v606, %v526
        %v623 = vmul.f32 %v607, %v527
        %v624 = vmul.f32 %v608, %v528
        %v625 = vmul.f32 %v609, %v529
        %v626 = vmul.f32 %v610, %v530
        %v627 = vmul.f32 %v611, %v531
        %v628 = vmul.f32 %v612, %v532
        %v629 = vmul.f32 %v613, %v533
        %v630 = vmul.f32 %v614, %v534
        %v631 = vmul.f32 %v615, %v535
        %v632 = vmul.f32 %v616, %v536
        %v633 = vmul.f32 %v617, %v537
        %v634 = vmul.f32 %v618, %v538
        %v635 = vmul.f32 %v619, %v539
        %v636 = vld [vmem:[%s225] sm:$0xff]
        %v637 = vld [vmem:[%s225 + $0x8] sm:$0xff]
        %v638 = vadd.f32 %v620, %v622
        %v639 = vadd.f32 %v638, %v624
        %v640 = vadd.f32 %v639, %v626
        %v641 = vadd.f32 %v640, %v628
        %v642 = vadd.f32 %v641, %v630
        %v643 = vadd.f32 %v642, %v632
        %v644 = vadd.f32 %v643, %v634
        %v645 = vadd.f32 %v621, %v623
        %v646 = vadd.f32 %v645, %v625
        %v647 = vadd.f32 %v646, %v627
        %v648 = vadd.f32 %v647, %v629
        %v649 = vadd.f32 %v648, %v631
        %v650 = vadd.f32 %v649, %v633
        %v651 = vadd.f32 %v650, %v635
        %v652 = vadd.f32 %v636, %v644
        %v653 = vadd.f32 %v637, %v651
        %654 = vst [vmem:[%s225] sm:$0xff] %v652
        %655 = vst [vmem:[%s225 + $0x8] sm:$0xff] %v653
        %s656 = sand.u32 %s98, 1
        %s657 = scalar_lea.sflag [#allocation4], %s656
        %s658 = sand.u32 %s98, 1
        %s659 = smul.addr %s658, 16
        %s660 = scalar_lea.vmem [#allocation7], %s659
        // Predicated region
        $region41: #{tpu_custom_call.1} parent=27 // pred_check
          %p661 = pneg %p108
        $region42: #{tpu_custom_call.1} parent=27 // pred_check_branch
          %663 = sbr.rel (%p661) target = $region44
        $region43: #{tpu_custom_call.1} parent=27 // pred_region
          %665 = vsyncadd %s657, 0
          %s666 = smul.addr %s26, 2
          %s667 = smul.addr %s666, 8
          %s668 = scalar_lea.hbm %s2, %s667
          %s670 = sshll.u32 %s660, 4
          %s671 = int_to_ptr.vmem [resolvable:$true] %s670
          %s672 = sshll.u32 %s668, 4
          %s673 = int_to_ptr.hbm [resolvable:$true] %s672
          %675 = dma.vmem_to_hbm [thread:$0]  %s671, 256, %s673, %s657
        $region44: #{tpu_custom_call.1} parent=27 // pred_fallthru
          _
      $region28: #{tpu_custom_call.1} parent=5 // pred_fallthru
        _
      %p676 = scmp.le.s32.totalorder 2, %s17
      // Predicated region
      $region45: #{tpu_custom_call.1} parent=5 // pred_check
        %p677 = pneg %p676
      $region46: #{tpu_custom_call.1} parent=5 // pred_check_branch
        %679 = sbr.rel (%p677) target = $region48
      $region47: #{tpu_custom_call.1} parent=5 // pred_region
        %s680 = ssub.s32 %s17, 2
        // Predicated region
        $region49: #{tpu_custom_call.1} parent=47 // pred_check
          %p681 = pneg %p114
        $region50: #{tpu_custom_call.1} parent=47 // pred_check_branch
          %683 = sbr.rel (%p681) target = $region52
        $region51: #{tpu_custom_call.1} parent=47 // pred_region
          %s684 = sand.u32 %s99, 1
          %s685 = scalar_lea.sflag [#allocation4], %s684
          %s686 = sand.u32 %s99, 1
          %s687 = smul.addr %s686, 16
          %s688 = scalar_lea.vmem [#allocation7], %s687
          %690 = dma.done %s685, 256
        $region52: #{tpu_custom_call.1} parent=47 // pred_fallthru
          _
      $region48: #{tpu_custom_call.1} parent=5 // pred_fallthru
        _
    $region6: #{tpu_custom_call.1} parent=1 // loop_footer
      %s21 = sadd.s32 1, %s17
    $region7: #{tpu_custom_call.1} parent=1 // loop_footer_branch
      %16 = sbr.rel target = $region3
    $region8: #{tpu_custom_call.1} parent=1 // loop_exit
      _
    %691 = vsyncpa [#allocation3], 1
    %s692 = scalar_lea.sflag [#allocation3], 1
    %693 = vsyncpa %s692, 1
    %694 = vsyncpa [#allocation6], 1
    %s695 = scalar_lea.sflag [#allocation6], 1
    %696 = vsyncpa %s695, 1
    %697 = vsyncpa [#allocation4], 1
    %s698 = scalar_lea.sflag [#allocation4], 1
    %699 = vsyncpa %s698, 1

</llo_original>
